<compile_context>
chip_gen: v6e
topology: v6e:2x2x1
jax: 0.10.0
libtpu: 0.0.40
codegen_flags: <defaults>
</compile_context>

<pallas_src>
import numpy as np
import jax
import jax.numpy as jnp
from jax.experimental import pallas as pl
from jax.experimental.pallas import tpu as pltpu

# Small, module-consistent shapes.
KERNEL_SIZES = (2, 3, 4)   # Ks
KERNEL_NUM = 3             # Co
CLASS_NUM = 1              # C
SEQ_LEN = 8                # L  ("embed_num" / tokens per example)
EMBED_DIM = 32             # D  ("embed_dim")
BATCH = 2

# Fused-kernel constants.
K_MAX = max(KERNEL_SIZES)                       # 4
T_MAX = SEQ_LEN - min(KERNEL_SIZES) + 1         # 7  (widest conv output)
NUM_COLS = 16                                   # len(Ks)*Co = 9 padded to 16 lanes
CONV_W_ROWS = K_MAX * EMBED_DIM                 # 128 (im2col contraction width)
ROW_CONV_B = CONV_W_ROWS                        # 128: conv bias row
ROW_FC_W = CONV_W_ROWS + 1                      # 129: fc weight row
ROW_FC_B = CONV_W_ROWS + 2                      # 130: fc bias (col 0)
ROW_MASK = CONV_W_ROWS + 3                      # 131..137: 0/1 time-validity mask
PACK_ROWS = ((ROW_MASK + T_MAX + 7) // 8) * 8   # 144 (sublane-aligned)


def kimcnn_kernel(x_ref, p_ref, out_ref):
    bt, L, D = x_ref.shape
    x = x_ref[...]                                           # (bt, L, D) bf16 — no f32 upcast

    # Packed parameter slab (single DMA, f32 in HBM; conv weight cast to bf16
    # for the MXU, everything else stays f32 for the VPU path).
    w = p_ref[0:CONV_W_ROWS, :].astype(jnp.bfloat16)         # (128, 16) fused im2col weight
    conv_b = p_ref[ROW_CONV_B:ROW_CONV_B + 1, :]             # (1, 16)
    fc_w = p_ref[ROW_FC_W:ROW_FC_W + 1, :]                   # (1, 16)
    fc_b = p_ref[ROW_FC_B:ROW_FC_B + 1, :]                   # (1, 16): fcb at col 0, rest 0
    tmask = p_ref[ROW_MASK:ROW_MASK + T_MAX, :]              # (7, 16) 0/1 time mask (no consts)

    # --- im2col: one fused MXU matmul instead of 9 tiny shifted matmuls. ---
    # Pad 2 trailing time rows in VMEM (tracer-derived zeros, no captured
    # constants; cheaper in HBM bytes than host-side padding to (N,10,D)),
    # then stack the K_MAX shifted views along the embedding axis so the
    # contraction width is the MXU-native 128.
    pad_rows = T_MAX + K_MAX - 1 - L                         # 2
    zeros = x[:, :pad_rows, :] * 0                           # (bt, 2, D) real zeros
    xp = jnp.concatenate([x, zeros], axis=1)                 # (bt, 10, D)
    xcat = jnp.concatenate(
        [xp[:, k:k + T_MAX, :] for k in range(K_MAX)], axis=-1)   # (bt, 7, 128) bf16
    xcat = xcat.reshape(bt * T_MAX, K_MAX * D)               # (bt*7, 128)

    # bf16 x bf16 -> f32 accumulate on the MXU.
    acc = jnp.dot(xcat, w, preferred_element_type=jnp.float32)    # (bt*7, 16) f32
    acc = jnp.maximum(acc + conv_b, 0.0)                     # bias + ReLU (f32 VPU)
    acc = acc.reshape(bt, T_MAX, NUM_COLS)

    # Mask invalid trailing time rows per branch (T = 7/6/5), then max-pool
    # over time.  0-masking is safe only because values are post-ReLU (>= 0)
    # and every column has at least one valid time step.
    feat = jnp.max(acc * tmask[None, :, :], axis=1)          # (bt, 16); cols 9..15 are 0

    # dropout: identity at inference.  # TODO(synk): training-mode dropout mask not applied.
    # Final FC on the VPU (9 MACs + lane reduce), fc bias folded in; sigmoid on EUP.
    logit = jnp.sum(feat * fc_w + fc_b, axis=-1)             # (bt,) f32
    out_ref[...] = jax.nn.sigmoid(logit)[None, :].astype(out_ref.dtype)  # (1, bt) lane-dense


def _pick_batch_tile(N):
    # ~4096 rows per grid step: bf16 working set (double-buffered x block +
    # im2col intermediate + f32 acc) stays well under the 32 MiB default /
    # v7x 64 MiB-per-TC VMEM budget, per-step DMA (~2 MiB bf16) swamps the
    # ~0.35 us grid-step overhead, and big batches get >= 2 "parallel" grid
    # steps so both v7x TensorCores are used.  Sub-batch tiles must be
    # multiples of 128 (lane-dense output stores + (8,128) BlockSpec rule).
    if N <= 4096 or N % 128 != 0:
        return N
    bt = 4096
    while N % bt:
        bt -= 128
    return bt


def kimcnn_forward(x, packed_params, *, batch_tile=None):
    assert CLASS_NUM == 1  # VPU lane-reduce FC path assumes a single output class
    N, L, D = x.shape
    if x.dtype != jnp.bfloat16:
        x = x.astype(jnp.bfloat16)      # mem-bound kernel: keep x traffic in bf16
    bt = _pick_batch_tile(N) if batch_tile is None else batch_tile
    # bt < N must be a multiple of 128 ((8,128) rule on the (1, bt) out block
    # and unmasked lane-dense vst); bt == N (full array) is always legal.
    assert bt == N or (bt % 128 == 0 and N % bt == 0), (N, bt)

    out = pl.pallas_call(
        kimcnn_kernel,
        out_shape=jax.ShapeDtypeStruct((1, N), jnp.float32),  # batch on the lane axis
        grid=(N // bt,),
        in_specs=[
            # If xprof still shows exposed DMA at large bt, add
            # pipeline_mode=pl.Buffered(3) here (one extra bt-block of VMEM).
            pl.BlockSpec((bt, L, D), lambda i: (i, 0, 0)),
            pl.BlockSpec((PACK_ROWS, NUM_COLS), lambda i: (0, 0)),  # single packed DMA
        ],
        out_specs=pl.BlockSpec((1, bt), lambda i: (0, i)),
        compiler_params=pltpu.CompilerParams(
            dimension_semantics=("parallel",),        # shards batch tiles across TCs
            vmem_limit_bytes=48 * 1024 * 1024),       # > 32 MiB default, < 64 MiB v7x physical
    )(x, packed_params)
    return out.reshape(N, CLASS_NUM)                  # layout plumbing back to module output


def pack_params(params):
    """Host-side packing of the 8 param tensors (+ time mask) into one f32 slab."""
    w2, b2, w3, b3, w4, b4, fcw, fcb = params
    D, Co = EMBED_DIM, KERNEL_NUM
    packed = jnp.zeros((PACK_ROWS, NUM_COLS), jnp.float32)
    for j, (w, b) in enumerate(((w2, b2), (w3, b3), (w4, b4))):
        K = KERNEL_SIZES[j]
        # im2col weight: row k*D + d, column j*Co + c  <-  w[k, d, c]
        packed = packed.at[:K * D, j * Co:(j + 1) * Co].set(
            w.reshape(K * D, Co).astype(jnp.float32))
        packed = packed.at[ROW_CONV_B, j * Co:(j + 1) * Co].set(b[0].astype(jnp.float32))
    nf = len(KERNEL_SIZES) * Co
    packed = packed.at[ROW_FC_W, :nf].set(fcw[:, 0].astype(jnp.float32))
    packed = packed.at[ROW_FC_B, 0].set(fcb[0, 0].astype(jnp.float32))
    # 0/1 time-validity mask (t, col): 1 for t < L - K + 1 of that column's branch.
    mask = np.zeros((T_MAX, NUM_COLS), np.float32)
    for c in range(nf):
        K = KERNEL_SIZES[c // Co]
        mask[:SEQ_LEN - K + 1, c] = 1.0
    packed = packed.at[ROW_MASK:ROW_MASK + T_MAX, :].set(jnp.asarray(mask))
    return packed


def kimcnn_reference(x, params):
    """Pure-JAX reference mirroring the PyTorch forward (eval mode).

    Conv weights are rounded through bf16 to match the kernel's MXU operand
    precision; all accumulation is f32 (Precision.HIGHEST)."""
    w2, b2, w3, b3, w4, b4, fcw, fcb = params
    xf = x.astype(jnp.float32)
    hp = jax.lax.Precision.HIGHEST
    N = x.shape[0]
    feats = []
    for w, b, K in ((w2, b2, KERNEL_SIZES[0]),
                    (w3, b3, KERNEL_SIZES[1]),
                    (w4, b4, KERNEL_SIZES[2])):
        wq = w.astype(jnp.bfloat16).astype(jnp.float32)
        T = SEQ_LEN - K + 1
        acc = jnp.zeros((N, T, KERNEL_NUM), jnp.float32)
        for k in range(K):
            acc = acc + jnp.einsum('nld,dc->nlc', xf[:, k:k + T, :], wq[k], precision=hp)
        acc = jnp.maximum(acc + b[None, :, :], 0.0)
        feats.append(jnp.max(acc, axis=1))                   # (N, Co)
    feat = jnp.concatenate(feats, axis=1)                    # (N, len(Ks)*Co)
    logit = jnp.einsum('nf,fc->nc', feat, fcw, precision=hp) + fcb
    return jax.nn.sigmoid(logit)


def init_params(key):
    D, Co, C = EMBED_DIM, KERNEL_NUM, CLASS_NUM
    keys = jax.random.split(key, 8)
    params = []
    for i, K in enumerate(KERNEL_SIZES):
        w = jax.random.normal(keys[2 * i], (K, D, Co), jnp.float32) * 0.1
        b = jax.random.normal(keys[2 * i + 1], (1, Co), jnp.float32) * 0.1
        params.extend([w, b])
    fcw = jax.random.normal(keys[6], (len(KERNEL_SIZES) * Co, C), jnp.float32) * 0.1
    fcb = jax.random.normal(keys[7], (1, C), jnp.float32) * 0.1
    params.extend([fcw, fcb])
    return tuple(params)


if __name__ == "__main__":
    key = jax.random.PRNGKey(0)
    k_x, k_p = jax.random.split(key)
    x = jax.random.normal(k_x, (BATCH, SEQ_LEN, EMBED_DIM), jnp.float32)
    params = init_params(k_p)
    packed = pack_params(params)

    x_bf16 = x.astype(jnp.bfloat16)   # mem-bound kernel: keep x in HBM as bf16
    out = kimcnn_forward(x_bf16, packed)
    out = jax.block_until_ready(out)

    ref = kimcnn_reference(x_bf16, params)
    assert out.shape == (BATCH, CLASS_NUM)
    assert jnp.allclose(out, ref, atol=1e-4, rtol=1e-4), (out, ref)

    print("KERNEL_OK")
</pallas_src>

<mosaic_0001>
module attributes {stable_mosaic.version = 11 : i64} {
  func.func @kimcnn_kernel(%arg0: i32, %arg1: memref<2x8x32xbf16, #tpu.memory_space<vmem>>, %arg2: memref<144x16xf32, #tpu.memory_space<vmem>>, %arg3: memref<1x2xf32, #tpu.memory_space<vmem>>) attributes {dimension_semantics = [#tpu.dimension_semantics<parallel>], iteration_bounds = array<i64: 1>, scalar_prefetch = 0 : i64, scratch_operands = 0 : i64, tpu.core_type = #tpu.core_type<tc>, window_params = [{transform_indices = @transform_0, window_bounds = array<i64: 2, 8, 32>}, {pipeline_mode = #tpu.pipeline_mode<synchronous>, transform_indices = @transform_1, window_bounds = array<i64: 144, 16>}, {transform_indices = @transform_2, window_bounds = array<i64: 1, 2>}]} {
    %c0 = arith.constant 0 : index
    %c0_0 = arith.constant 0 : index
    %c0_1 = arith.constant 0 : index
    %0 = vector.load %arg1[%c0, %c0_0, %c0_1] : memref<2x8x32xbf16, #tpu.memory_space<vmem>>, vector<2x8x32xbf16>
    %c0_2 = arith.constant 0 : index
    %c0_3 = arith.constant 0 : index
    %1 = vector.load %arg2[%c0_2, %c0_3] : memref<144x16xf32, #tpu.memory_space<vmem>>, vector<128x16xf32>
    %2 = arith.truncf %1 : vector<128x16xf32> to vector<128x16xbf16>
    %c128 = arith.constant 128 : index
    %c0_4 = arith.constant 0 : index
    %3 = vector.load %arg2[%c128, %c0_4] : memref<144x16xf32, #tpu.memory_space<vmem>>, vector<1x16xf32>
    %c129 = arith.constant 129 : index
    %c0_5 = arith.constant 0 : index
    %4 = vector.load %arg2[%c129, %c0_5] : memref<144x16xf32, #tpu.memory_space<vmem>>, vector<1x16xf32>
    %c130 = arith.constant 130 : index
    %c0_6 = arith.constant 0 : index
    %5 = vector.load %arg2[%c130, %c0_6] : memref<144x16xf32, #tpu.memory_space<vmem>>, vector<1x16xf32>
    %c131 = arith.constant 131 : index
    %c0_7 = arith.constant 0 : index
    %6 = vector.load %arg2[%c131, %c0_7] : memref<144x16xf32, #tpu.memory_space<vmem>>, vector<7x16xf32>
    %7 = vector.extract_strided_slice %0 {offsets = [0, 0, 0], sizes = [2, 2, 32], strides = [1, 1, 1]} : vector<2x8x32xbf16> to vector<2x2x32xbf16>
    %cst = arith.constant 0.000000e+00 : bf16
    %8 = vector.broadcast %cst : bf16 to vector<2x2x32xbf16>
    %9 = arith.mulf %7, %8 : vector<2x2x32xbf16>
    %10 = tpu.concatenate %0, %9 in 1 : vector<2x8x32xbf16>, vector<2x2x32xbf16> -> vector<2x10x32xbf16>
    %11 = vector.extract_strided_slice %10 {offsets = [0, 0, 0], sizes = [2, 7, 32], strides = [1, 1, 1]} : vector<2x10x32xbf16> to vector<2x7x32xbf16>
    %12 = vector.extract_strided_slice %10 {offsets = [0, 1, 0], sizes = [2, 7, 32], strides = [1, 1, 1]} : vector<2x10x32xbf16> to vector<2x7x32xbf16>
    %13 = vector.extract_strided_slice %10 {offsets = [0, 2, 0], sizes = [2, 7, 32], strides = [1, 1, 1]} : vector<2x10x32xbf16> to vector<2x7x32xbf16>
    %14 = vector.extract_strided_slice %10 {offsets = [0, 3, 0], sizes = [2, 7, 32], strides = [1, 1, 1]} : vector<2x10x32xbf16> to vector<2x7x32xbf16>
    %15 = tpu.concatenate %11, %12, %13, %14 in 2 : vector<2x7x32xbf16>, vector<2x7x32xbf16>, vector<2x7x32xbf16>, vector<2x7x32xbf16> -> vector<2x7x128xbf16>
    %16 = vector.shape_cast %15 : vector<2x7x128xbf16> to vector<14x128xbf16>
    %cst_8 = arith.constant dense<0.000000e+00> : vector<14x16xf32>
    %17 = tpu.matmul %16, %2, %cst_8 {dimension_numbers = #tpu.dot_dimension_numbers<[1], [0], [0], [1], [0, 0, 1, 1], [], []>} : vector<14x128xbf16>, vector<128x16xbf16>, vector<14x16xf32> -> vector<14x16xf32>
    %18 = vector.broadcast %3 : vector<1x16xf32> to vector<14x16xf32>
    %19 = arith.addf %17, %18 : vector<14x16xf32>
    %cst_9 = arith.constant 0.000000e+00 : f32
    %20 = vector.broadcast %cst_9 : f32 to vector<14x16xf32>
    %21 = arith.maximumf %19, %20 : vector<14x16xf32>
    %22 = vector.shape_cast %21 : vector<14x16xf32> to vector<2x7x16xf32>
    %23 = vector.shape_cast %6 : vector<7x16xf32> to vector<1x7x16xf32>
    %24 = vector.broadcast %23 : vector<1x7x16xf32> to vector<2x7x16xf32>
    %25 = arith.mulf %22, %24 : vector<2x7x16xf32>
    %cst_10 = arith.constant dense<0xFF800000> : vector<2x16xf32>
    %26 = vector.multi_reduction <maximumf>, %25, %cst_10 [1] : vector<2x7x16xf32> to vector<2x16xf32>
    %27 = vector.broadcast %4 : vector<1x16xf32> to vector<2x16xf32>
    %28 = arith.mulf %26, %27 : vector<2x16xf32>
    %29 = vector.broadcast %5 : vector<1x16xf32> to vector<2x16xf32>
    %30 = arith.addf %28, %29 : vector<2x16xf32>
    %cst_11 = arith.constant dense<0.000000e+00> : vector<2xf32>
    %31 = vector.multi_reduction <add>, %30, %cst_11 [1] : vector<2x16xf32> to vector<2xf32>
    %32 = arith.negf %31 : vector<2xf32>
    %33 = math.exp %32 : vector<2xf32>
    %cst_12 = arith.constant 1.000000e+00 : f32
    %34 = vector.broadcast %cst_12 : f32 to vector<2xf32>
    %35 = arith.addf %34, %33 : vector<2xf32>
    %36 = arith.divf %34, %35 : vector<2xf32>
    %37 = vector.shape_cast %36 : vector<2xf32> to vector<1x2xf32>
    %c0_13 = arith.constant 0 : index
    %c0_14 = arith.constant 0 : index
    %38 = vector.load %arg3[%c0_13, %c0_14] : memref<1x2xf32, #tpu.memory_space<vmem>>, vector<1x2xf32>
    tpu.vector_store %arg3[%c0_13, %c0_14], %37 {strides = array<i32>} : memref<1x2xf32, #tpu.memory_space<vmem>>, vector<1x2xf32>,
    return
  }
  func.func @transform_0(%arg0: i32) -> (i32, i32, i32) {
    %c0_i32 = arith.constant 0 : i32
    %c0_i32_0 = arith.constant 0 : i32
    %c0_i32_1 = arith.constant 0 : i32
    return %arg0, %c0_i32, %c0_i32_0 : i32, i32, i32
  }
  func.func @transform_1(%arg0: i32) -> (i32, i32) {
    %c0_i32 = arith.constant 0 : i32
    %c0_i32_0 = arith.constant 0 : i32
    %c0_i32_1 = arith.constant 0 : i32
    return %c0_i32, %c0_i32_0 : i32, i32
  }
  func.func @transform_2(%arg0: i32) -> (i32, i32) {
    %c0_i32 = arith.constant 0 : i32
    %c0_i32_0 = arith.constant 0 : i32
    return %c0_i32, %arg0 : i32, i32
  }
}

</mosaic_0001>

<llo_original>
// kernel: tpu_custom_call.1
$region0: #{tpu_custom_call.1}
  #allocation0 [shape = 'u32[]', space=smem, size = 0x4, offset = 0x4, fixed_abs, tag = 'smem constant byte address 0x4 - core index']
  #allocation1 [shape = 'u32[144,128]{1,0:T(1,128)}', space=vmem, size = 0x12000, scoped, tag = 'internal scratch']
  %s0 = inlined_call_operand.vmem [shape: bf16[2,8,32], index: 0, kind: input, shape index: {}]
  %s1 = inlined_call_operand.vmem [shape: f32[144,16], index: 1, kind: input, shape index: {}]
  %s2 = inlined_call_operand.hbm [shape: f32[1,2], index: 2, kind: output, shape index: {}]
  %s3 = sld [smem:[#allocation0]]
  $region18: #{tpu_custom_call.1} parent=0
    _
  %s5 = ssub.s32 1, %s3
  %s6 = scalar_select 0, %s5, %s3
  $region1: #{tpu_custom_call.1} parent=0
    #allocation2 [shape = 'u8[512]{0}', space=vmem, size = 0x400, scoped, tag = 'output window, operand 0, single buffered']
    #allocation3 [shape = 's32[1]{0}', space=sflag, size = 0x4, scoped, tag = 'scoped memory for tpu_custom_call.1']
    %7 = vsyncpa [#allocation3], 0
    // Predicated region
    $region2: #{tpu_custom_call.1} parent=1 // pred_check
      _
    $region3: #{tpu_custom_call.1} parent=1 // pred_check_branch
      %9 = sbr.rel (0) target = $region5
    $region4: #{tpu_custom_call.1} parent=1 // pred_region
      _
    $region5: #{tpu_custom_call.1} parent=1 // pred_fallthru
      _
    // Predicated region
    $region6: #{tpu_custom_call.1} parent=1 // pred_check
      _
    $region7: #{tpu_custom_call.1} parent=1 // pred_check_branch
      %11 = sbr.rel (0) target = $region9
    $region8: #{tpu_custom_call.1} parent=1 // pred_region
      _
    $region9: #{tpu_custom_call.1} parent=1 // pred_fallthru
      _
    %v13 = vld [vmem:[%s0] sm:$0xf]
    %v14 = vld [vmem:[%s0 + $0x4] sm:$0xf]
    %v15 = vld [vmem:[%s1] sm:$0xff]
    %v16 = vld [vmem:[%s1 + $0x8] sm:$0xff]
    %v17 = vld [vmem:[%s1 + $0x10] sm:$0xff]
    %v18 = vld [vmem:[%s1 + $0x18] sm:$0xff]
    %v19 = vld [vmem:[%s1 + $0x20] sm:$0xff]
    %v20 = vld [vmem:[%s1 + $0x28] sm:$0xff]
    %v21 = vld [vmem:[%s1 + $0x30] sm:$0xff]
    %v22 = vld [vmem:[%s1 + $0x38] sm:$0xff]
    %v23 = vld [vmem:[%s1 + $0x40] sm:$0xff]
    %v24 = vld [vmem:[%s1 + $0x48] sm:$0xff]
    %v25 = vld [vmem:[%s1 + $0x50] sm:$0xff]
    %v26 = vld [vmem:[%s1 + $0x58] sm:$0xff]
    %v27 = vld [vmem:[%s1 + $0x60] sm:$0xff]
    %v28 = vld [vmem:[%s1 + $0x68] sm:$0xff]
    %v29 = vld [vmem:[%s1 + $0x70] sm:$0xff]
    %v30 = vld [vmem:[%s1 + $0x78] sm:$0xff]
    %v31 = vpack.c.bf16 %v16, %v15
    %v32 = vpack.c.bf16 %v18, %v17
    %v33 = vpack.c.bf16 %v20, %v19
    %v34 = vpack.c.bf16 %v22, %v21
    %v35 = vpack.c.bf16 %v24, %v23
    %v36 = vpack.c.bf16 %v26, %v25
    %v37 = vpack.c.bf16 %v28, %v27
    %v38 = vpack.c.bf16 %v30, %v29
    %v39 = vld [vmem:[%s1 + $0x80] sm:$0x1]
    %v40 = vld [vmem:[%s1 + $0x81] sm:$0x1]
    %v41 = vld [vmem:[%s1 + $0x82] sm:$0x1]
    %v42 = vld [vmem:[%s1 + $0x83] sm:$0x7f]
    %v43 = vmul.bf16 %v13, 0
    %v44 = vmul.bf16 %v14, 0
    %v47 = vunpack.c.l.b16 %v43
    %v48 = vunpack.c.l.b16 %v44
    %v49 = vpack.c.b16 %v47, %v47
    %v50 = vpack.c.b16 %v48, %v48
    %vm51 = vcmask 1043456
    %v54 = vsel %vm51, %v13, %v49
    %v57 = vsel %vm51, %v14, %v50
    %v58 = vshrl.u32 %v54, 16
    %v60 = vshll.u32 %v54, 16
    %v62 = vrot.slane %v60, 1
    %v63 = vor.u32 %v58, %v62
    %v64 = vshrl.u32 %v57, 16
    %v66 = vshll.u32 %v57, 16
    %v68 = vrot.slane %v66, 1
    %v69 = vor.u32 %v64, %v68
    %70 = vrot.lane.b32.xlu0 %v63, 32
    %v71 = vpop.permute.xlu0 %70
    %72 = vrot.lane.b32.xlu0 %v69, 32
    %v73 = vpop.permute.xlu0 %72
    %v76 = vrot.slane %v54, 1
    %v77 = vrot.slane %v57, 1
    %78 = vrot.lane.b32.xlu0 %v76, 64
    %v79 = vpop.permute.xlu0 %78
    %80 = vrot.lane.b32.xlu0 %v77, 64
    %v81 = vpop.permute.xlu0 %80
    %v82 = vrot.slane %v58, 1
    %v83 = vrot.slane %v60, 2
    %v84 = vor.u32 %v82, %v83
    %v85 = vrot.slane %v64, 1
    %v86 = vrot.slane %v66, 2
    %v87 = vor.u32 %v85, %v86
    %88 = vrot.lane.b32.xlu0 %v84, 96
    %v89 = vpop.permute.xlu0 %88
    %90 = vrot.lane.b32.xlu0 %v87, 96
    %v91 = vpop.permute.xlu0 %90
    %vm92 = vcmask 261120
    %v94 = vsel %vm92, %v54, %v71
    %v96 = vsel %vm92, %v57, %v73
    %vm97 = vcmask 523264
    %v99 = vsel %vm97, %v94, %v79
    %v101 = vsel %vm97, %v96, %v81
    %vm102 = vcmask 785408
    %v104 = vsel %vm102, %v99, %v89
    %v106 = vsel %vm102, %v101, %v91
    %v110 = vunpack.c.l.s4 1966171168
    %v111 = vunpack.c.0.s8 %v110
    %v112 = vlaneseq
    %v113 = vshrl.u32 %v112, 7
    %v114 = vsub.s32 %v111, %v113
    %v115 = vrot.slane %v104, %v114
    %v116 = vcombine.high %v115, %v115
    %v118 = vunpack.c.l.s4 1966171168
    %v119 = vunpack.c.0.s8 %v118
    %v120 = vlaneseq
    %v121 = vshrl.u32 %v120, 7
    %v122 = vsub.s32 %v119, %v121
    %v123 = vrot.slane %v115, %v122
    %v125 = vunpack.c.l.s4 1966171168
    %v126 = vunpack.c.0.s8 %v125
    %v127 = vlaneseq
    %v128 = vshrl.u32 %v127, 7
    %v129 = vsub.s32 %v126, %v128
    %v130 = vrot.slane %v116, %v129
    %v131 = vcombine.high %v123, %v123
    %v132 = vcombine.high %v130, %v130
    %v134 = vunpack.c.l.s4 1966171168
    %v135 = vunpack.c.0.s8 %v134
    %v136 = vlaneseq
    %v137 = vshrl.u32 %v136, 7
    %v138 = vsub.s32 %v135, %v137
    %v139 = vrot.slane %v106, %v138
    %v140 = vcombine.high %v139, %v139
    %v142 = vunpack.c.l.s4 1966171168
    %v143 = vunpack.c.0.s8 %v142
    %v144 = vlaneseq
    %v145 = vshrl.u32 %v144, 7
    %v146 = vsub.s32 %v143, %v145
    %v147 = vrot.slane %v139, %v146
    %v149 = vunpack.c.l.s4 1966171168
    %v150 = vunpack.c.0.s8 %v149
    %v151 = vlaneseq
    %v152 = vshrl.u32 %v151, 7
    %v153 = vsub.s32 %v150, %v152
    %v154 = vrot.slane %v140, %v153
    %v155 = vcombine.high %v147, %v147
    %v156 = vcombine.high %v154, %v154
    %v157 = vunpack.i.l.s16 %v123
    %v158 = vunpack.i.h.s16 %v123
    %v159 = vunpack.i.l.s16 %v130
    %v160 = vunpack.i.h.s16 %v130
    %v161 = vunpack.i.l.s16 %v131
    %v162 = vunpack.i.h.s16 %v131
    %v163 = vunpack.i.l.s16 %v132
    %v164 = vunpack.i.l.s16 %v147
    %v165 = vunpack.i.h.s16 %v147
    %v166 = vunpack.i.l.s16 %v154
    %v167 = vunpack.i.h.s16 %v154
    %v168 = vunpack.i.l.s16 %v155
    %v169 = vunpack.i.h.s16 %v155
    %v170 = vunpack.i.l.s16 %v156
    %v171 = vlaneseq
    %v172 = vshrl.u32 %v171, 7
    %v173 = vsub.s32 0, %v172
    %v174 = vrot.slane %v39, %v173
    %v175 = vpack.i.b16 %v158, %v157
    %v176 = vpack.i.b16 %v160, %v159
    %v177 = vpack.i.b16 %v162, %v161
    %v178 = vpack.i.b16 %v164, %v163
    %v179 = vpack.i.b16 %v166, %v165
    %v180 = vpack.i.b16 %v168, %v167
    %v181 = vpack.i.b16 %v170, %v169
    %v182 = vcombine.low %v175, %v176
    %v183 = vcombine.low %v177, %v178
    %v184 = vcombine.low %v179, %v180
    %v186 = vunpack.c.l.s4 1966171168
    %v187 = vunpack.c.0.s8 %v186
    %v188 = vlaneseq
    %v189 = vshrl.u32 %v188, 7
    %v190 = vsub.s32 %v187, %v189
    %v191 = vrot.slane %v182, %v190
    %v193 = vunpack.c.l.s4 1966171168
    %v194 = vunpack.c.0.s8 %v193
    %v195 = vlaneseq
    %v196 = vshrl.u32 %v195, 7
    %v197 = vsub.s32 %v194, %v196
    %v198 = vrot.slane %v183, %v197
    %v200 = vunpack.c.l.s4 1966171168
    %v201 = vunpack.c.0.s8 %v200
    %v202 = vlaneseq
    %v203 = vshrl.u32 %v202, 7
    %v204 = vsub.s32 %v201, %v203
    %v205 = vrot.slane %v184, %v204
    %v207 = vunpack.c.l.s4 1966171168
    %v208 = vunpack.c.0.s8 %v207
    %v209 = vlaneseq
    %v210 = vshrl.u32 %v209, 7
    %v211 = vsub.s32 %v208, %v210
    %v212 = vrot.slane %v181, %v211
    %v213 = vcombine.low %v191, %v198
    %v214 = vcombine.low %v205, %v212
    %v216 = vunpack.c.l.s4 1966171168
    %v217 = vunpack.c.0.s8 %v216
    %v218 = vlaneseq
    %v219 = vshrl.u32 %v218, 7
    %v220 = vsub.s32 %v217, %v219
    %v221 = vrot.slane %v213, %v220
    %v223 = vunpack.c.l.s4 1966171168
    %v224 = vunpack.c.0.s8 %v223
    %v225 = vlaneseq
    %v226 = vshrl.u32 %v225, 7
    %v227 = vsub.s32 %v224, %v226
    %v228 = vrot.slane %v214, %v227
    %v229 = vcombine.low %v221, %v228
    %231 = vmatprep.subr.bf16.mxu0 0
    %232 = vmatpush1.bf16.msra.mxu0 %v38
    %233 = vmatprep.subr.bf16.mxu0 0
    %234 = vmatpush1.bf16.msra.mxu0 %v37
    %235 = vmatprep.subr.bf16.mxu0 0
    %236 = vmatpush1.bf16.msra.mxu0 %v36
    %237 = vmatprep.subr.bf16.mxu0 0
    %238 = vmatpush1.bf16.msra.mxu0 %v35
    %239 = vmatprep.subr.bf16.mxu0 0
    %240 = vmatpush1.bf16.msra.mxu0 %v34
    %241 = vmatprep.subr.bf16.mxu0 0
    %242 = vmatpush1.bf16.msra.mxu0 %v33
    %243 = vmatprep.subr.bf16.mxu0 0
    %244 = vmatpush1.bf16.msra.mxu0 %v32
    %245 = vmatprep.subr.bf16.mxu0 0
    %246 = vmatpush1.bf16.msra.mxu0 %v31
    %247 = vmatprep.subr.bf16.mxu0 0
    %248 = vmatpush2.bf16.msra.mxu0 0
    %249 = vmatprep.subr.bf16.mxu0 0
    %250 = vmatpush2.bf16.msra.mxu0 0
    %251 = vmatprep.subr.bf16.mxu0 0
    %252 = vmatpush2.bf16.msra.mxu0 0
    %253 = vmatprep.subr.bf16.mxu0 0
    %254 = vmatpush2.bf16.msra.mxu0 0
    %255 = vmatprep.subr.bf16.mxu0 0
    %256 = vmatpush2.bf16.msra.mxu0 0
    %257 = vmatprep.subr.bf16.mxu0 0
    %258 = vmatpush2.bf16.msra.mxu0 0
    %259 = vmatprep.subr.bf16.mxu0 0
    %260 = vmatpush2.bf16.msra.mxu0 0
    %261 = vmatprep.subr.bf16.mxu0 0
    %262 = vmatpush2.bf16.msra.mxu0 0
    %263 = vmatprep.mubr.bf16.mxu0 0
    %264 = vmatmul.mubr.bf16.gmra.mxu0 %v229
    %v265 = vpop.f32.mrf.mxu0
    %v266 = vadd.f32 %v174, %v265
    %v267 = vpop.f32.mrf.mxu0
    %v268 = vpop.f32.mrf.mxu0
    %v269 = vadd.f32 %v174, %v268
    %v270 = vpop.f32.mrf.mxu0
    %271 = vdwg.mxu0
    %v272 = vmax.f32 %v266, 0.0
    %v273 = vmax.f32 %v269, 0.0
    %v276 = vcombine.high %v272, %v272
    %v278 = vunpack.c.l.s4 1966171168
    %v279 = vunpack.c.0.s8 %v278
    %v280 = vlaneseq
    %v281 = vshrl.u32 %v280, 7
    %v282 = vsub.s32 %v279, %v281
    %v283 = vrot.slane %v272, %v282
    %v285 = vunpack.c.l.s4 1966171168
    %v286 = vunpack.c.0.s8 %v285
    %v287 = vlaneseq
    %v288 = vshrl.u32 %v287, 7
    %v289 = vsub.s32 %v286, %v288
    %v290 = vrot.slane %v276, %v289
    %v291 = vcombine.high %v283, %v283
    %v292 = vcombine.high %v290, %v290
    %v294 = vunpack.c.l.s4 1966171168
    %v295 = vunpack.c.0.s8 %v294
    %v296 = vlaneseq
    %v297 = vshrl.u32 %v296, 7
    %v298 = vsub.s32 %v295, %v297
    %v299 = vrot.slane %v283, %v298
    %v301 = vunpack.c.l.s4 1966171168
    %v302 = vunpack.c.0.s8 %v301
    %v303 = vlaneseq
    %v304 = vshrl.u32 %v303, 7
    %v305 = vsub.s32 %v302, %v304
    %v306 = vrot.slane %v290, %v305
    %v308 = vunpack.c.l.s4 1966171168
    %v309 = vunpack.c.0.s8 %v308
    %v310 = vlaneseq
    %v311 = vshrl.u32 %v310, 7
    %v312 = vsub.s32 %v309, %v311
    %v313 = vrot.slane %v291, %v312
    %v315 = vunpack.c.l.s4 1966171168
    %v316 = vunpack.c.0.s8 %v315
    %v317 = vlaneseq
    %v318 = vshrl.u32 %v317, 7
    %v319 = vsub.s32 %v316, %v318
    %v320 = vrot.slane %v292, %v319
    %v321 = vcombine.high %v299, %v299
    %v322 = vcombine.high %v306, %v306
    %v323 = vcombine.high %v313, %v313
    %v324 = vcombine.high %v320, %v320
    %v325 = vcombine.high %v273, %v273
    %v327 = vunpack.c.l.s4 1966171168
    %v328 = vunpack.c.0.s8 %v327
    %v329 = vlaneseq
    %v330 = vshrl.u32 %v329, 7
    %v331 = vsub.s32 %v328, %v330
    %v332 = vrot.slane %v273, %v331
    %v334 = vunpack.c.l.s4 1966171168
    %v335 = vunpack.c.0.s8 %v334
    %v336 = vlaneseq
    %v337 = vshrl.u32 %v336, 7
    %v338 = vsub.s32 %v335, %v337
    %v339 = vrot.slane %v325, %v338
    %v340 = vcombine.high %v332, %v332
    %v341 = vcombine.high %v339, %v339
    %v343 = vunpack.c.l.s4 1966171168
    %v344 = vunpack.c.0.s8 %v343
    %v345 = vlaneseq
    %v346 = vshrl.u32 %v345, 7
    %v347 = vsub.s32 %v344, %v346
    %v348 = vrot.slane %v332, %v347
    %v350 = vunpack.c.l.s4 1966171168
    %v351 = vunpack.c.0.s8 %v350
    %v352 = vlaneseq
    %v353 = vshrl.u32 %v352, 7
    %v354 = vsub.s32 %v351, %v353
    %v355 = vrot.slane %v339, %v354
    %v357 = vunpack.c.l.s4 1966171168
    %v358 = vunpack.c.0.s8 %v357
    %v359 = vlaneseq
    %v360 = vshrl.u32 %v359, 7
    %v361 = vsub.s32 %v358, %v360
    %v362 = vrot.slane %v340, %v361
    %v364 = vunpack.c.l.s4 1966171168
    %v365 = vunpack.c.0.s8 %v364
    %v366 = vlaneseq
    %v367 = vshrl.u32 %v366, 7
    %v368 = vsub.s32 %v365, %v367
    %v369 = vrot.slane %v341, %v368
    %v370 = vcombine.high %v348, %v348
    %v371 = vcombine.high %v362, %v362
    %v387 = vcombine.high %v42, %v42
    %v389 = vunpack.c.l.s4 1966171168
    %v390 = vunpack.c.0.s8 %v389
    %v391 = vlaneseq
    %v392 = vshrl.u32 %v391, 7
    %v393 = vsub.s32 %v390, %v392
    %v394 = vrot.slane %v42, %v393
    %v396 = vunpack.c.l.s4 1966171168
    %v397 = vunpack.c.0.s8 %v396
    %v398 = vlaneseq
    %v399 = vshrl.u32 %v398, 7
    %v400 = vsub.s32 %v397, %v399
    %v401 = vrot.slane %v387, %v400
    %v402 = vcombine.high %v394, %v394
    %v403 = vcombine.high %v401, %v401
    %v405 = vunpack.c.l.s4 1966171168
    %v406 = vunpack.c.0.s8 %v405
    %v407 = vlaneseq
    %v408 = vshrl.u32 %v407, 7
    %v409 = vsub.s32 %v406, %v408
    %v410 = vrot.slane %v394, %v409
    %v412 = vunpack.c.l.s4 1966171168
    %v413 = vunpack.c.0.s8 %v412
    %v414 = vlaneseq
    %v415 = vshrl.u32 %v414, 7
    %v416 = vsub.s32 %v413, %v415
    %v417 = vrot.slane %v401, %v416
    %v419 = vunpack.c.l.s4 1966171168
    %v420 = vunpack.c.0.s8 %v419
    %v421 = vlaneseq
    %v422 = vshrl.u32 %v421, 7
    %v423 = vsub.s32 %v420, %v422
    %v424 = vrot.slane %v402, %v423
    %v426 = vunpack.c.l.s4 1966171168
    %v427 = vunpack.c.0.s8 %v426
    %v428 = vlaneseq
    %v429 = vshrl.u32 %v428, 7
    %v430 = vsub.s32 %v427, %v429
    %v431 = vrot.slane %v403, %v430
    %v432 = vcombine.high %v410, %v410
    %v433 = vcombine.high %v417, %v417
    %v434 = vcombine.high %v424, %v424
    %v442 = vmul.f32 %v299, %v410
    %v443 = vmul.f32 %v313, %v424
    %v444 = vmul.f32 %v321, %v432
    %v445 = vmul.f32 %v323, %v434
    %v446 = vmul.f32 %v306, %v417
    %v447 = vmul.f32 %v320, %v431
    %v448 = vmul.f32 %v322, %v433
    %v449 = vmul.f32 %v324, %v410
    %v450 = vmul.f32 %v348, %v424
    %v451 = vmul.f32 %v362, %v432
    %v452 = vmul.f32 %v370, %v434
    %v453 = vmul.f32 %v371, %v417
    %v454 = vmul.f32 %v355, %v431
    %v455 = vmul.f32 %v369, %v433
    %v470 = vcombine.low %v442, %v443
    %v471 = vcombine.low %v444, %v445
    %v472 = vcombine.low %v446, %v447
    %v474 = vunpack.c.l.s4 1966171168
    %v475 = vunpack.c.0.s8 %v474
    %v476 = vlaneseq
    %v477 = vshrl.u32 %v476, 7
    %v478 = vsub.s32 %v475, %v477
    %v479 = vrot.slane %v470, %v478
    %v481 = vunpack.c.l.s4 1966171168
    %v482 = vunpack.c.0.s8 %v481
    %v483 = vlaneseq
    %v484 = vshrl.u32 %v483, 7
    %v485 = vsub.s32 %v482, %v484
    %v486 = vrot.slane %v471, %v485
    %v488 = vunpack.c.l.s4 1966171168
    %v489 = vunpack.c.0.s8 %v488
    %v490 = vlaneseq
    %v491 = vshrl.u32 %v490, 7
    %v492 = vsub.s32 %v489, %v491
    %v493 = vrot.slane %v472, %v492
    %v495 = vunpack.c.l.s4 1966171168
    %v496 = vunpack.c.0.s8 %v495
    %v497 = vlaneseq
    %v498 = vshrl.u32 %v497, 7
    %v499 = vsub.s32 %v496, %v498
    %v500 = vrot.slane %v448, %v499
    %v501 = vcombine.low %v479, %v486
    %v502 = vcombine.low %v493, %v500
    %v504 = vunpack.c.l.s4 1966171168
    %v505 = vunpack.c.0.s8 %v504
    %v506 = vlaneseq
    %v507 = vshrl.u32 %v506, 7
    %v508 = vsub.s32 %v505, %v507
    %v509 = vrot.slane %v501, %v508
    %v511 = vunpack.c.l.s4 1966171168
    %v512 = vunpack.c.0.s8 %v511
    %v513 = vlaneseq
    %v514 = vshrl.u32 %v513, 7
    %v515 = vsub.s32 %v512, %v514
    %v516 = vrot.slane %v502, %v515
    %v517 = vcombine.low %v509, %v516
    %v518 = vcombine.low %v449, %v450
    %v519 = vcombine.low %v451, %v452
    %v520 = vcombine.low %v453, %v454
    %v522 = vunpack.c.l.s4 1966171168
    %v523 = vunpack.c.0.s8 %v522
    %v524 = vlaneseq
    %v525 = vshrl.u32 %v524, 7
    %v526 = vsub.s32 %v523, %v525
    %v527 = vrot.slane %v518, %v526
    %v529 = vunpack.c.l.s4 1966171168
    %v530 = vunpack.c.0.s8 %v529
    %v531 = vlaneseq
    %v532 = vshrl.u32 %v531, 7
    %v533 = vsub.s32 %v530, %v532
    %v534 = vrot.slane %v519, %v533
    %v536 = vunpack.c.l.s4 1966171168
    %v537 = vunpack.c.0.s8 %v536
    %v538 = vlaneseq
    %v539 = vshrl.u32 %v538, 7
    %v540 = vsub.s32 %v537, %v539
    %v541 = vrot.slane %v520, %v540
    %v543 = vunpack.c.l.s4 1966171168
    %v544 = vunpack.c.0.s8 %v543
    %v545 = vlaneseq
    %v546 = vshrl.u32 %v545, 7
    %v547 = vsub.s32 %v544, %v546
    %v548 = vrot.slane %v455, %v547
    %v549 = vcombine.low %v527, %v534
    %v550 = vcombine.low %v541, %v548
    %v552 = vunpack.c.l.s4 1966171168
    %v553 = vunpack.c.0.s8 %v552
    %v554 = vlaneseq
    %v555 = vshrl.u32 %v554, 7
    %v556 = vsub.s32 %v553, %v555
    %v557 = vrot.slane %v549, %v556
    %v559 = vunpack.c.l.s4 1966171168
    %v560 = vunpack.c.0.s8 %v559
    %v561 = vlaneseq
    %v562 = vshrl.u32 %v561, 7
    %v563 = vsub.s32 %v560, %v562
    %v564 = vrot.slane %v550, %v563
    %v565 = vcombine.low %v557, %v564
    %vm568 = vcmask 129024
    %v569 = vsel %vm568, %v517, -inf
    %v570 = vrot.slane %v569, 4
    %v571 = vmax.f32 %v569, %v570
    %v572 = vrot.slane %v571, 2
    %v573 = vmax.f32 %v571, %v572
    %v574 = vrot.slane %v573, 1
    %v575 = vmax.f32 %v573, %v574
    %v576 = vsel %vm568, %v565, -inf
    %v577 = vrot.slane %v576, 4
    %v578 = vmax.f32 %v576, %v577
    %v579 = vrot.slane %v578, 2
    %v580 = vmax.f32 %v578, %v579
    %v581 = vrot.slane %v580, 1
    %v582 = vmax.f32 %v580, %v581
    %v583 = vlaneseq
    %v584 = vshrl.u32 %v583, 7
    %v585 = vsub.s32 0, %v584
    %v586 = vrot.slane %v40, %v585
    %v587 = vmul.f32 %v575, %v586
    %v588 = vmul.f32 %v582, %v586
    %v589 = vlaneseq
    %v590 = vshrl.u32 %v589, 7
    %v591 = vsub.s32 0, %v590
    %v592 = vrot.slane %v41, %v591
    %v593 = vadd.f32 %v587, %v592
    %v594 = vadd.f32 %v588, %v592
    %v597 = vrot.slane %v594, 7
    %vm598 = vcmask 1041409
    %v599 = vsel %vm598, %v597, %v593
    %vm601 = vcmask 123904
    %v602 = vsel %vm601, %v599, 0.0
    %603 = vadd.xlane.f32.xlu0 %v602
    %v604 = vpop.xlane.xlu0 %603
    %v605 = vxor.u32 %v604, 2147483648
    %v606 = vmul.f32 %v605, 1.442695
    %v607 = vpow.pop %v606
    %v608 = vadd.f32 %v607, 1.0
    %v609 = vrcp.pop %v608
    %v610 = vmul.f32 1.0, %v609
    %v612 = vlaneseq
    %v613 = vand.u32 %v612, 127
    %v614 = vlaneseq
    %v615 = vshrl.u32 %v614, 7
    %v616 = vsub.s32 %v613, %v615
    %v617 = vrot.slane %v610, %v616
    %vm619 = vcmask 8192
    %620 = vst.msk [vmem:[#allocation2] sm:$0x1] %vm619, %v617
    // Predicated region
    $region10: #{tpu_custom_call.1} parent=1 // pred_check
      _
    $region11: #{tpu_custom_call.1} parent=1 // pred_check_branch
      %622 = sbr.rel (0) target = $region13
    $region12: #{tpu_custom_call.1} parent=1 // pred_region
      %s624 = ssub.s32 16, 16
      %625 = vsyncadd [#allocation3], %s624
      %s627 = sshll.u32 [#allocation2], 4
      %s628 = int_to_ptr.vmem [resolvable:$true] %s627
      %630 = dma.vmem_to_hbm [thread:$0]  %s628, 16, %s2, [#allocation3]
    $region13: #{tpu_custom_call.1} parent=1 // pred_fallthru
      _
    // Predicated region
    $region14: #{tpu_custom_call.1} parent=1 // pred_check
      _
    $region15: #{tpu_custom_call.1} parent=1 // pred_check_branch
      %632 = sbr.rel (0) target = $region17
    $region16: #{tpu_custom_call.1} parent=1 // pred_region
      %633 = dma.done [#allocation3], 16
    $region17: #{tpu_custom_call.1} parent=1 // pred_fallthru
      _
    %634 = vsyncpa [#allocation3], 1

</llo_original>
